<compile_context>
chip_gen: v7x
topology: tpu7x:2x2x1
jax: 0.10.0
libtpu: 0.0.40
codegen_flags: <defaults>
</compile_context>

<pallas_src>
import jax
import jax.numpy as jnp
from jax.experimental import pallas as pl
from jax.experimental.pallas import tpu as pltpu


def _round_up(x, m):
    return ((x + m - 1) // m) * m


def _leaky_relu(h, slope=0.2):
    # max(h, slope*h) == LeakyReLU(slope) for 0 < slope < 1 (2 VALU ops/vreg).
    return jnp.maximum(h, slope * h)


def discriminator_kernel(x_ref, w1_ref, w2_ref, w3_ref, w4_ref, w5_ref, o_ref):
    """One batch tile.

    x_ref is (tb, F) float32 straight from HBM.  The tile is transposed to
    (F, tb) inside the kernel so the batch rides the lane axis: every hidden
    matmul is then W (H, K) @ h (K, tb) on the MXU (f32 accumulation) and the
    final (1, tb) store is lane-dense.
    """
    xT = x_ref[...].T.astype(jnp.bfloat16)                         # (F, tb)
    # Layer 1: (H, F) @ (F, tb) -> (H, tb); bf16 MXU, f32 accumulation.
    h = jnp.dot(w1_ref[...], xT, preferred_element_type=jnp.float32)
    h = _leaky_relu(h.astype(jnp.bfloat16))                        # bf16 activations
    # Hidden layers 2-4 (Dropout is identity in eval mode).
    for w_ref in (w2_ref, w3_ref, w4_ref):
        h = jnp.dot(w_ref[...], h, preferred_element_type=jnp.float32)
        h = _leaky_relu(h.astype(jnp.bfloat16))
    # Final Linear(128 -> 1) on the MXU: (1, H) @ (H, tb) -> lane-dense (1, tb).
    logits = jnp.dot(w5_ref[...], h, preferred_element_type=jnp.float32)
    o_ref[...] = jax.nn.sigmoid(logits).astype(o_ref.dtype)


def discriminator_forward(x, w1, w2, w3, w4, w5, *, block_b=2048):
    """x: (B, F) float32; weights in PyTorch nn.Linear layout (out, in).

    Returns sigmoid probabilities of shape (B, 1), float32.
    """
    B, F = x.shape
    H = w1.shape[0]

    # Lane-aligned batch tile (always a multiple of 128).
    if block_b % 128 != 0:
        block_b = _round_up(block_b, 128)
    b128 = _round_up(B, 128)
    tb = min(block_b, b128)
    if b128 > 128:
        # Ensure the "parallel" batch axis has >= 2 grid steps so both v7x
        # TensorCores get work; no-op for large B where tb stays == block_b.
        tb = min(tb, _round_up(b128 // 2, 128))
    assert tb % 128 == 0

    n_steps = pl.cdiv(B, tb)
    b_pad = n_steps * tb          # lane-dense output slab; tail sliced off below

    # Weights: bf16 for the MXU, PyTorch (out, in) layout kept as-is (~140 KB
    # total); constant index_maps keep them VMEM-resident across grid steps.
    w1b, w2b, w3b, w4b = (w.astype(jnp.bfloat16) for w in (w1, w2, w3, w4))
    w5r = w5.reshape(1, H).astype(jnp.bfloat16)

    flops_per_row = 2 * (F * H + 3 * H * H + H)
    bytes_accessed = (B * F * 4
                      + (w1b.size + w2b.size + w3b.size + w4b.size + w5r.size) * 2
                      + b_pad * 4)

    # NOTE: at tb <= 2048 the kernel uses well under 4 MiB of VMEM; only if
    # block_b is pushed past ~4096 would vmem_limit_bytes need raising
    # (v5e's default scoped-VMEM limit is 16 MiB).
    out = pl.pallas_call(
        discriminator_kernel,
        out_shape=jax.ShapeDtypeStruct((1, b_pad), jnp.float32),
        grid=(n_steps,),
        in_specs=[
            pl.BlockSpec((tb, F), lambda i: (i, 0)),    # x tile: pipelined per step
            pl.BlockSpec((H, F), lambda i: (0, 0)),     # weights: VMEM-resident
            pl.BlockSpec((H, H), lambda i: (0, 0)),
            pl.BlockSpec((H, H), lambda i: (0, 0)),
            pl.BlockSpec((H, H), lambda i: (0, 0)),
            pl.BlockSpec((1, H), lambda i: (0, 0)),
        ],
        out_specs=pl.BlockSpec((1, tb), lambda i: (0, i)),
        compiler_params=pltpu.CompilerParams(
            dimension_semantics=("parallel",)),
        cost_estimate=pl.CostEstimate(
            flops=B * flops_per_row,
            transcendentals=B,
            bytes_accessed=bytes_accessed),
    )(x, w1b, w2b, w3b, w4b, w5r)

    return out[0, :B].reshape(B, 1)


def init_params(key, input_size, hidden=128):
    # PyTorch nn.Linear layout (out_features, in_features), Kaiming-uniform-ish
    # scale like the PyTorch default. bias=False in the spec -> no biases.
    ks = jax.random.split(key, 5)

    def lin(k, fan_out, fan_in):
        bound = 1.0 / jnp.sqrt(fan_in)
        return jax.random.uniform(k, (fan_out, fan_in), jnp.float32,
                                  minval=-bound, maxval=bound)

    w1 = lin(ks[0], hidden, input_size)
    w2 = lin(ks[1], hidden, hidden)
    w3 = lin(ks[2], hidden, hidden)
    w4 = lin(ks[3], hidden, hidden)
    w5 = lin(ks[4], 1, hidden)
    return w1, w2, w3, w4, w5


def reference_forward(x, w1, w2, w3, w4, w5):
    # f32 reference with PyTorch semantics: y = x @ W^T per layer.
    h = jnp.maximum(x @ w1.T, 0.2 * (x @ w1.T))
    h = jnp.maximum(h @ w2.T, 0.2 * (h @ w2.T))
    h = jnp.maximum(h @ w3.T, 0.2 * (h @ w3.T))
    h = jnp.maximum(h @ w4.T, 0.2 * (h @ w4.T))
    return jax.nn.sigmoid(h @ w5.T)


if __name__ == "__main__":
    key = jax.random.PRNGKey(0)
    k_x, k_x2, k_w = jax.random.split(key, 3)

    input_size = 32
    params = init_params(k_w, input_size)

    # Small batch: single grid step, clipped-tail DMA on the x tile.
    x_small = jax.random.normal(k_x, (8, input_size), jnp.float32)
    out_small = jax.block_until_ready(discriminator_forward(x_small, *params))
    ref_small = reference_forward(x_small, *params)
    assert out_small.shape == (8, 1)
    assert jnp.allclose(out_small, ref_small, atol=3e-2, rtol=3e-2), (
        float(jnp.max(jnp.abs(out_small - ref_small))))

    # Non-multiple batch: exercises a >=2-step parallel grid (v7x dual-TC) and
    # the clipped tail tile, with results sliced back to (B, 1).
    x_big = jax.random.normal(k_x2, (1100, input_size), jnp.float32)
    out_big = jax.block_until_ready(discriminator_forward(x_big, *params))
    ref_big = reference_forward(x_big, *params)
    assert out_big.shape == (1100, 1)
    assert jnp.allclose(out_big, ref_big, atol=3e-2, rtol=3e-2), (
        float(jnp.max(jnp.abs(out_big - ref_big))))

    print("KERNEL_OK")
</pallas_src>

<mosaic_0001>
module attributes {stable_mosaic.version = 11 : i64} {
  func.func @discriminator_kernel(%arg0: i32, %arg1: memref<128x32xf32, #tpu.memory_space<vmem>>, %arg2: memref<128x32xbf16, #tpu.memory_space<vmem>>, %arg3: memref<128x128xbf16, #tpu.memory_space<vmem>>, %arg4: memref<128x128xbf16, #tpu.memory_space<vmem>>, %arg5: memref<128x128xbf16, #tpu.memory_space<vmem>>, %arg6: memref<1x128xbf16, #tpu.memory_space<vmem>>, %arg7: memref<1x128xf32, #tpu.memory_space<vmem>>) attributes {dimension_semantics = [#tpu.dimension_semantics<parallel>], iteration_bounds = array<i64: 1>, scalar_prefetch = 0 : i64, scratch_operands = 0 : i64, tpu.core_type = #tpu.core_type<tc>, window_params = [{transform_indices = @transform_0, window_bounds = array<i64: 128, 32>}, {pipeline_mode = #tpu.pipeline_mode<synchronous>, transform_indices = @transform_1, window_bounds = array<i64: 128, 32>}, {pipeline_mode = #tpu.pipeline_mode<synchronous>, transform_indices = @transform_2, window_bounds = array<i64: 128, 128>}, {pipeline_mode = #tpu.pipeline_mode<synchronous>, transform_indices = @transform_3, window_bounds = array<i64: 128, 128>}, {pipeline_mode = #tpu.pipeline_mode<synchronous>, transform_indices = @transform_4, window_bounds = array<i64: 128, 128>}, {pipeline_mode = #tpu.pipeline_mode<synchronous>, transform_indices = @transform_5, window_bounds = array<i64: 1, 128>}, {transform_indices = @transform_6, window_bounds = array<i64: 1, 128>}]} {
    %c0 = arith.constant 0 : index
    %c0_0 = arith.constant 0 : index
    %0 = vector.load %arg1[%c0, %c0_0] : memref<128x32xf32, #tpu.memory_space<vmem>>, vector<128x32xf32>
    %1 = tpu.transpose %0, [1, 0] : vector<128x32xf32> -> vector<32x128xf32>
    %2 = arith.truncf %1 : vector<32x128xf32> to vector<32x128xbf16>
    %c0_1 = arith.constant 0 : index
    %c0_2 = arith.constant 0 : index
    %3 = vector.load %arg2[%c0_1, %c0_2] : memref<128x32xbf16, #tpu.memory_space<vmem>>, vector<128x32xbf16>
    %cst = arith.constant dense<0.000000e+00> : vector<128x128xf32>
    %4 = tpu.matmul %3, %2, %cst {dimension_numbers = #tpu.dot_dimension_numbers<[1], [0], [0], [1], [0, 0, 1, 1], [], []>} : vector<128x32xbf16>, vector<32x128xbf16>, vector<128x128xf32> -> vector<128x128xf32>
    %5 = arith.truncf %4 : vector<128x128xf32> to vector<128x128xbf16>
    %cst_3 = arith.constant 2.001950e-01 : bf16
    %6 = vector.broadcast %cst_3 : bf16 to vector<128x128xbf16>
    %7 = arith.mulf %6, %5 : vector<128x128xbf16>
    %8 = arith.maximumf %5, %7 : vector<128x128xbf16>
    %c0_4 = arith.constant 0 : index
    %c0_5 = arith.constant 0 : index
    %9 = vector.load %arg3[%c0_4, %c0_5] : memref<128x128xbf16, #tpu.memory_space<vmem>>, vector<128x128xbf16>
    %cst_6 = arith.constant dense<0.000000e+00> : vector<128x128xf32>
    %10 = tpu.matmul %9, %8, %cst_6 {dimension_numbers = #tpu.dot_dimension_numbers<[1], [0], [0], [1], [0, 0, 1, 1], [], []>} : vector<128x128xbf16>, vector<128x128xbf16>, vector<128x128xf32> -> vector<128x128xf32>
    %11 = arith.truncf %10 : vector<128x128xf32> to vector<128x128xbf16>
    %cst_7 = arith.constant 2.001950e-01 : bf16
    %12 = vector.broadcast %cst_7 : bf16 to vector<128x128xbf16>
    %13 = arith.mulf %12, %11 : vector<128x128xbf16>
    %14 = arith.maximumf %11, %13 : vector<128x128xbf16>
    %c0_8 = arith.constant 0 : index
    %c0_9 = arith.constant 0 : index
    %15 = vector.load %arg4[%c0_8, %c0_9] : memref<128x128xbf16, #tpu.memory_space<vmem>>, vector<128x128xbf16>
    %cst_10 = arith.constant dense<0.000000e+00> : vector<128x128xf32>
    %16 = tpu.matmul %15, %14, %cst_10 {dimension_numbers = #tpu.dot_dimension_numbers<[1], [0], [0], [1], [0, 0, 1, 1], [], []>} : vector<128x128xbf16>, vector<128x128xbf16>, vector<128x128xf32> -> vector<128x128xf32>
    %17 = arith.truncf %16 : vector<128x128xf32> to vector<128x128xbf16>
    %cst_11 = arith.constant 2.001950e-01 : bf16
    %18 = vector.broadcast %cst_11 : bf16 to vector<128x128xbf16>
    %19 = arith.mulf %18, %17 : vector<128x128xbf16>
    %20 = arith.maximumf %17, %19 : vector<128x128xbf16>
    %c0_12 = arith.constant 0 : index
    %c0_13 = arith.constant 0 : index
    %21 = vector.load %arg5[%c0_12, %c0_13] : memref<128x128xbf16, #tpu.memory_space<vmem>>, vector<128x128xbf16>
    %cst_14 = arith.constant dense<0.000000e+00> : vector<128x128xf32>
    %22 = tpu.matmul %21, %20, %cst_14 {dimension_numbers = #tpu.dot_dimension_numbers<[1], [0], [0], [1], [0, 0, 1, 1], [], []>} : vector<128x128xbf16>, vector<128x128xbf16>, vector<128x128xf32> -> vector<128x128xf32>
    %23 = arith.truncf %22 : vector<128x128xf32> to vector<128x128xbf16>
    %cst_15 = arith.constant 2.001950e-01 : bf16
    %24 = vector.broadcast %cst_15 : bf16 to vector<128x128xbf16>
    %25 = arith.mulf %24, %23 : vector<128x128xbf16>
    %26 = arith.maximumf %23, %25 : vector<128x128xbf16>
    %c0_16 = arith.constant 0 : index
    %c0_17 = arith.constant 0 : index
    %27 = vector.load %arg6[%c0_16, %c0_17] : memref<1x128xbf16, #tpu.memory_space<vmem>>, vector<1x128xbf16>
    %cst_18 = arith.constant dense<0.000000e+00> : vector<1x128xf32>
    %28 = tpu.matmul %27, %26, %cst_18 {dimension_numbers = #tpu.dot_dimension_numbers<[1], [0], [0], [1], [0, 0, 1, 1], [], []>} : vector<1x128xbf16>, vector<128x128xbf16>, vector<1x128xf32> -> vector<1x128xf32>
    %29 = arith.negf %28 : vector<1x128xf32>
    %30 = math.exp %29 : vector<1x128xf32>
    %cst_19 = arith.constant 1.000000e+00 : f32
    %31 = vector.broadcast %cst_19 : f32 to vector<1x128xf32>
    %32 = arith.addf %31, %30 : vector<1x128xf32>
    %33 = arith.divf %31, %32 : vector<1x128xf32>
    %c0_20 = arith.constant 0 : index
    %c0_21 = arith.constant 0 : index
    %34 = vector.load %arg7[%c0_20, %c0_21] : memref<1x128xf32, #tpu.memory_space<vmem>>, vector<1x128xf32>
    tpu.vector_store %arg7[%c0_20, %c0_21], %33 {strides = array<i32>} : memref<1x128xf32, #tpu.memory_space<vmem>>, vector<1x128xf32>,
    return
  }
  func.func @transform_0(%arg0: i32) -> (i32, i32) {
    %c0_i32 = arith.constant 0 : i32
    %c0_i32_0 = arith.constant 0 : i32
    return %arg0, %c0_i32 : i32, i32
  }
  func.func @transform_1(%arg0: i32) -> (i32, i32) {
    %c0_i32 = arith.constant 0 : i32
    %c0_i32_0 = arith.constant 0 : i32
    %c0_i32_1 = arith.constant 0 : i32
    return %c0_i32, %c0_i32_0 : i32, i32
  }
  func.func @transform_2(%arg0: i32) -> (i32, i32) {
    %c0_i32 = arith.constant 0 : i32
    %c0_i32_0 = arith.constant 0 : i32
    %c0_i32_1 = arith.constant 0 : i32
    return %c0_i32, %c0_i32_0 : i32, i32
  }
  func.func @transform_3(%arg0: i32) -> (i32, i32) {
    %c0_i32 = arith.constant 0 : i32
    %c0_i32_0 = arith.constant 0 : i32
    %c0_i32_1 = arith.constant 0 : i32
    return %c0_i32, %c0_i32_0 : i32, i32
  }
  func.func @transform_4(%arg0: i32) -> (i32, i32) {
    %c0_i32 = arith.constant 0 : i32
    %c0_i32_0 = arith.constant 0 : i32
    %c0_i32_1 = arith.constant 0 : i32
    return %c0_i32, %c0_i32_0 : i32, i32
  }
  func.func @transform_5(%arg0: i32) -> (i32, i32) {
    %c0_i32 = arith.constant 0 : i32
    %c0_i32_0 = arith.constant 0 : i32
    %c0_i32_1 = arith.constant 0 : i32
    return %c0_i32, %c0_i32_0 : i32, i32
  }
  func.func @transform_6(%arg0: i32) -> (i32, i32) {
    %c0_i32 = arith.constant 0 : i32
    %c0_i32_0 = arith.constant 0 : i32
    return %c0_i32, %arg0 : i32, i32
  }
}

</mosaic_0001>

<llo_original>
// kernel: tpu_custom_call.1
$region0: #{tpu_custom_call.1}
  #allocation0 [shape = 'u32[]', space=smem, size = 0x4, offset = 0x4, fixed_abs, tag = 'smem constant byte address 0x4 - core index']
  #allocation1 [shape = 'u32[144,128]{1,0:T(1,128)}', space=vmem, size = 0x12000, scoped, tag = 'internal scratch']
  %s0 = inlined_call_operand.vmem [shape: f32[8,32], index: 0, kind: input, shape index: {}]
  %s1 = inlined_call_operand.vmem [shape: bf16[128,32], index: 1, kind: input, shape index: {}]
  %s2 = inlined_call_operand.vmem [shape: bf16[128,128], index: 2, kind: input, shape index: {}]
  %s3 = inlined_call_operand.hbm [shape: bf16[128,128], index: 3, kind: input, shape index: {}]
  %s4 = inlined_call_operand.hbm [shape: bf16[128,128], index: 4, kind: input, shape index: {}]
  %s5 = inlined_call_operand.vmem [shape: bf16[1,128], index: 5, kind: input, shape index: {}]
  %s6 = inlined_call_operand.hbm [shape: f32[1,128], index: 6, kind: output, shape index: {}]
  %s7 = sld [smem:[#allocation0]]
  $region42: #{tpu_custom_call.1} parent=0
    _
  %s9 = ssub.s32 1, %s7
  %s10 = scalar_select 0, %s9, %s7
  $region1: #{tpu_custom_call.1} parent=0
    #allocation2 [shape = 'u8[32768]{0}', space=vmem, size = 0x8000, scoped, tag = 'input window, operand 3, single buffered']
    #allocation3 [shape = 's32[1]{0}', space=sflag, size = 0x4, scoped, tag = 'scoped memory for tpu_custom_call.1']
    #allocation4 [shape = 's32[1]{0}', space=sflag, size = 0x4, scoped, tag = 'scoped memory for tpu_custom_call.1']
    #allocation5 [shape = 'u8[32768]{0}', space=vmem, size = 0x8000, scoped, tag = 'input window, operand 4, single buffered']
    #allocation6 [shape = 's32[1]{0}', space=sflag, size = 0x4, scoped, tag = 'scoped memory for tpu_custom_call.1']
    #allocation7 [shape = 'u8[512]{0}', space=vmem, size = 0x400, scoped, tag = 'output window, operand 0, single buffered']
    %11 = vsyncpa [#allocation3], 0
    %12 = vsyncpa [#allocation6], 0
    %13 = vsyncpa [#allocation4], 0
    // Predicated region
    $region2: #{tpu_custom_call.1} parent=1 // pred_check
      _
    $region3: #{tpu_custom_call.1} parent=1 // pred_check_branch
      %15 = sbr.rel (0) target = $region5
    $region4: #{tpu_custom_call.1} parent=1 // pred_region
      _
    $region5: #{tpu_custom_call.1} parent=1 // pred_fallthru
      _
    // Predicated region
    $region6: #{tpu_custom_call.1} parent=1 // pred_check
      _
    $region7: #{tpu_custom_call.1} parent=1 // pred_check_branch
      %17 = sbr.rel (0) target = $region9
    $region8: #{tpu_custom_call.1} parent=1 // pred_region
      _
    $region9: #{tpu_custom_call.1} parent=1 // pred_fallthru
      _
    // Predicated region
    $region10: #{tpu_custom_call.1} parent=1 // pred_check
      _
    $region11: #{tpu_custom_call.1} parent=1 // pred_check_branch
      %19 = sbr.rel (0) target = $region13
    $region12: #{tpu_custom_call.1} parent=1 // pred_region
      _
    $region13: #{tpu_custom_call.1} parent=1 // pred_fallthru
      _
    // Predicated region
    $region14: #{tpu_custom_call.1} parent=1 // pred_check
      _
    $region15: #{tpu_custom_call.1} parent=1 // pred_check_branch
      %21 = sbr.rel (0) target = $region17
    $region16: #{tpu_custom_call.1} parent=1 // pred_region
      %s23 = ssub.s32 1024, 1024
      %24 = vsyncadd [#allocation3], %s23
      %s25 = sshll.u32 [#allocation2], 4
      %s26 = int_to_ptr.vmem [resolvable:$true] %s25
      %31 = dma.hbm_to_vmem [thread:$0]  %s3, 1024, %s26, [#allocation3], 64, 64, 4
    $region17: #{tpu_custom_call.1} parent=1 // pred_fallthru
      _
    // Predicated region
    $region18: #{tpu_custom_call.1} parent=1 // pred_check
      _
    $region19: #{tpu_custom_call.1} parent=1 // pred_check_branch
      %33 = sbr.rel (0) target = $region21
    $region20: #{tpu_custom_call.1} parent=1 // pred_region
      %s35 = ssub.s32 1024, 1024
      %36 = vsyncadd [#allocation6], %s35
      %s37 = sshll.u32 [#allocation5], 4
      %s38 = int_to_ptr.vmem [resolvable:$true] %s37
      %43 = dma.hbm_to_vmem [thread:$0]  %s4, 1024, %s38, [#allocation6], 64, 64, 4
    $region21: #{tpu_custom_call.1} parent=1 // pred_fallthru
      _
    // Predicated region
    $region22: #{tpu_custom_call.1} parent=1 // pred_check
      _
    $region23: #{tpu_custom_call.1} parent=1 // pred_check_branch
      %45 = sbr.rel (0) target = $region25
    $region24: #{tpu_custom_call.1} parent=1 // pred_region
      _
    $region25: #{tpu_custom_call.1} parent=1 // pred_fallthru
      _
    // Predicated region
    $region26: #{tpu_custom_call.1} parent=1 // pred_check
      _
    $region27: #{tpu_custom_call.1} parent=1 // pred_check_branch
      %47 = sbr.rel (0) target = $region29
    $region28: #{tpu_custom_call.1} parent=1 // pred_region
      %48 = dma.done [#allocation3], 1024
    $region29: #{tpu_custom_call.1} parent=1 // pred_fallthru
      _
    // Predicated region
    $region30: #{tpu_custom_call.1} parent=1 // pred_check
      _
    $region31: #{tpu_custom_call.1} parent=1 // pred_check_branch
      %50 = sbr.rel (0) target = $region33
    $region32: #{tpu_custom_call.1} parent=1 // pred_region
      %51 = dma.done [#allocation6], 1024
    $region33: #{tpu_custom_call.1} parent=1 // pred_fallthru
      _
    %v54 = vld [vmem:[%s0] sm:$0xff]
    %v55 = vld [vmem:[%s0 + $0x8] sm:$0xff]
    %v56 = vld [vmem:[%s0 + $0x10] sm:$0xff]
    %v57 = vld [vmem:[%s0 + $0x18] sm:$0xff]
    %v58 = vld [vmem:[%s0 + $0x20] sm:$0xff]
    %v59 = vld [vmem:[%s0 + $0x28] sm:$0xff]
    %v60 = vld [vmem:[%s0 + $0x30] sm:$0xff]
    %v61 = vld [vmem:[%s0 + $0x38] sm:$0xff]
    %v62 = vld [vmem:[%s0 + $0x40] sm:$0xff]
    %v63 = vld [vmem:[%s0 + $0x48] sm:$0xff]
    %v64 = vld [vmem:[%s0 + $0x50] sm:$0xff]
    %v65 = vld [vmem:[%s0 + $0x58] sm:$0xff]
    %v66 = vld [vmem:[%s0 + $0x60] sm:$0xff]
    %v67 = vld [vmem:[%s0 + $0x68] sm:$0xff]
    %v68 = vld [vmem:[%s0 + $0x70] sm:$0xff]
    %v69 = vld [vmem:[%s0 + $0x78] sm:$0xff]
    %70 = vxpose.xlu0.b32.start [1/16] %v54, 128
    %71 = vxpose.xlu0.b32.cont [2/16] %v55, 128
    %72 = vxpose.xlu0.b32.cont [3/16] %v56, 128
    %73 = vxpose.xlu0.b32.cont [4/16] %v57, 128
    %74 = vxpose.xlu0.b32.cont [5/16] %v58, 128
    %75 = vxpose.xlu0.b32.cont [6/16] %v59, 128
    %76 = vxpose.xlu0.b32.cont [7/16] %v60, 128
    %77 = vxpose.xlu0.b32.cont [8/16] %v61, 128
    %78 = vxpose.xlu0.b32.cont [9/16] %v62, 128
    %79 = vxpose.xlu0.b32.cont [10/16] %v63, 128
    %80 = vxpose.xlu0.b32.cont [11/16] %v64, 128
    %81 = vxpose.xlu0.b32.cont [12/16] %v65, 128
    %82 = vxpose.xlu0.b32.cont [13/16] %v66, 128
    %83 = vxpose.xlu0.b32.cont [14/16] %v67, 128
    %84 = vxpose.xlu0.b32.cont [15/16] %v68, 128
    %85 = vxpose.xlu0.b32.end [16/16] %v69, 128
    %v86 = vpop.trf.xlu0
    %v87 = vpop.trf.xlu0
    %v88 = vpop.trf.xlu0
    %v89 = vpop.trf.xlu0
    %v90 = vpop.trf.xlu0
    %v91 = vpop.trf.xlu0
    %v92 = vpop.trf.xlu0
    %v93 = vpop.trf.xlu0
    %v94 = vpop.trf.xlu0
    %v95 = vpop.trf.xlu0
    %v96 = vpop.trf.xlu0
    %v97 = vpop.trf.xlu0
    %v98 = vpop.trf.xlu0
    %v99 = vpop.trf.xlu0
    %v100 = vpop.trf.xlu0
    %v101 = vpop.trf.xlu0
    %v102 = vpack.c.bf16 %v87, %v86
    %v103 = vpack.c.bf16 %v89, %v88
    %v104 = vld [vmem:[%s1] sm:$0xf]
    %v105 = vld [vmem:[%s1 + $0x4] sm:$0xf]
    %v106 = vld [vmem:[%s1 + $0x8] sm:$0xf]
    %v107 = vld [vmem:[%s1 + $0xc] sm:$0xf]
    %v108 = vld [vmem:[%s1 + $0x10] sm:$0xf]
    %v109 = vld [vmem:[%s1 + $0x14] sm:$0xf]
    %v110 = vld [vmem:[%s1 + $0x18] sm:$0xf]
    %v111 = vld [vmem:[%s1 + $0x1c] sm:$0xf]
    %v112 = vld [vmem:[%s1 + $0x20] sm:$0xf]
    %v113 = vld [vmem:[%s1 + $0x24] sm:$0xf]
    %v114 = vld [vmem:[%s1 + $0x28] sm:$0xf]
    %v115 = vld [vmem:[%s1 + $0x2c] sm:$0xf]
    %v116 = vld [vmem:[%s1 + $0x30] sm:$0xf]
    %v117 = vld [vmem:[%s1 + $0x34] sm:$0xf]
    %v118 = vld [vmem:[%s1 + $0x38] sm:$0xf]
    %v119 = vld [vmem:[%s1 + $0x3c] sm:$0xf]
    %v136 = vunpack.c.l.b16 %v104
    %v137 = vunpack.c.l.b16 %v105
    %v138 = vunpack.c.l.b16 %v106
    %v139 = vunpack.c.l.b16 %v107
    %v140 = vunpack.c.l.b16 %v108
    %v141 = vunpack.c.l.b16 %v109
    %v142 = vunpack.c.l.b16 %v110
    %v143 = vunpack.c.l.b16 %v111
    %v144 = vunpack.c.l.b16 %v112
    %v145 = vunpack.c.l.b16 %v113
    %v146 = vunpack.c.l.b16 %v114
    %v147 = vunpack.c.l.b16 %v115
    %v148 = vunpack.c.l.b16 %v116
    %v149 = vunpack.c.l.b16 %v117
    %v150 = vunpack.c.l.b16 %v118
    %v151 = vunpack.c.l.b16 %v119
    %v152 = vpack.c.b16 %v137, %v136
    %v153 = vpack.c.b16 %v139, %v138
    %v154 = vpack.c.b16 %v141, %v140
    %v155 = vpack.c.b16 %v143, %v142
    %v156 = vpack.c.b16 %v145, %v144
    %v157 = vpack.c.b16 %v147, %v146
    %v158 = vpack.c.b16 %v149, %v148
    %v159 = vpack.c.b16 %v151, %v150
    %vm160 = vcmask 261120
    %v162 = vsel %vm160, %v152, 0
    %v165 = vsel %vm160, %v153, 0
    %v168 = vsel %vm160, %v154, 0
    %v171 = vsel %vm160, %v155, 0
    %v174 = vsel %vm160, %v156, 0
    %v177 = vsel %vm160, %v157, 0
    %v180 = vsel %vm160, %v158, 0
    %v183 = vsel %vm160, %v159, 0
    %185 = vmatprep.subr.bf16.mxu0 0
    %186 = vmatpush1.bf16.msra.mxu0 %v102
    %187 = vmatprep.subr.bf16.mxu0 0
    %188 = vmatpush1.bf16.msra.mxu0 %v103
    %189 = vmatprep.subr.bf16.mxu0 0
    %190 = vmatpush1.bf16.msra.mxu0 0
    %191 = vmatprep.subr.bf16.mxu0 0
    %192 = vmatpush1.bf16.msra.mxu0 0
    %193 = vmatprep.subr.bf16.mxu0 0
    %194 = vmatpush1.bf16.msra.mxu0 0
    %195 = vmatprep.subr.bf16.mxu0 0
    %196 = vmatpush1.bf16.msra.mxu0 0
    %197 = vmatprep.subr.bf16.mxu0 0
    %198 = vmatpush1.bf16.msra.mxu0 0
    %199 = vmatprep.subr.bf16.mxu0 0
    %200 = vmatpush1.bf16.msra.mxu0 0
    %201 = vmatprep.subr.bf16.mxu0 0
    %202 = vmatpush1.bf16.msra.mxu0 0
    %203 = vmatprep.subr.bf16.mxu0 0
    %204 = vmatpush1.bf16.msra.mxu0 0
    %205 = vmatprep.subr.bf16.mxu0 0
    %206 = vmatpush1.bf16.msra.mxu0 0
    %207 = vmatprep.subr.bf16.mxu0 0
    %208 = vmatpush1.bf16.msra.mxu0 0
    %209 = vmatprep.subr.bf16.mxu0 0
    %210 = vmatpush1.bf16.msra.mxu0 0
    %211 = vmatprep.subr.bf16.mxu0 0
    %212 = vmatpush1.bf16.msra.mxu0 0
    %213 = vmatprep.subr.bf16.mxu0 0
    %214 = vmatpush1.bf16.msra.mxu0 0
    %215 = vmatprep.subr.bf16.mxu0 0
    %216 = vmatpush1.bf16.msra.mxu0 0
    %217 = vmatprep.mubr.bf16.mxu0 0
    %218 = vmatmul.mubr.bf16.gmra.mrb[0].mxu0 %v162
    %v219 = vpop.f32.mrb[0].mxu0
    %v220 = vadd.f32 0.0, %v219
    %v221 = vpop.f32.mrb[0].mxu0
    %v222 = vpop.f32.mrb[0].mxu0
    %v223 = vadd.f32 0.0, %v222
    %v224 = vpop.f32.mrb[0].mxu0
    %225 = vmatprep.mubr.bf16.mxu0 0
    %226 = vmatmul.mubr.bf16.gmra.mrb[0].mxu0 %v165
    %v227 = vpop.f32.mrb[0].mxu0
    %v228 = vadd.f32 0.0, %v227
    %v229 = vpop.f32.mrb[0].mxu0
    %v230 = vpop.f32.mrb[0].mxu0
    %v231 = vadd.f32 0.0, %v230
    %v232 = vpop.f32.mrb[0].mxu0
    %233 = vmatprep.mubr.bf16.mxu0 0
    %234 = vmatmul.mubr.bf16.gmra.mrb[0].mxu0 %v168
    %v235 = vpop.f32.mrb[0].mxu0
    %v236 = vadd.f32 0.0, %v235
    %v237 = vpop.f32.mrb[0].mxu0
    %v238 = vpop.f32.mrb[0].mxu0
    %v239 = vadd.f32 0.0, %v238
    %v240 = vpop.f32.mrb[0].mxu0
    %241 = vmatprep.mubr.bf16.mxu0 0
    %242 = vmatmul.mubr.bf16.gmra.mrb[0].mxu0 %v171
    %v243 = vpop.f32.mrb[0].mxu0
    %v244 = vadd.f32 0.0, %v243
    %v245 = vpop.f32.mrb[0].mxu0
    %v246 = vpop.f32.mrb[0].mxu0
    %v247 = vadd.f32 0.0, %v246
    %v248 = vpop.f32.mrb[0].mxu0
    %249 = vmatprep.mubr.bf16.mxu0 0
    %250 = vmatmul.mubr.bf16.gmra.mrb[0].mxu0 %v174
    %v251 = vpop.f32.mrb[0].mxu0
    %v252 = vadd.f32 0.0, %v251
    %v253 = vpop.f32.mrb[0].mxu0
    %v254 = vpop.f32.mrb[0].mxu0
    %v255 = vadd.f32 0.0, %v254
    %v256 = vpop.f32.mrb[0].mxu0
    %257 = vmatprep.mubr.bf16.mxu0 0
    %258 = vmatmul.mubr.bf16.gmra.mrb[0].mxu0 %v177
    %v259 = vpop.f32.mrb[0].mxu0
    %v260 = vadd.f32 0.0, %v259
    %v261 = vpop.f32.mrb[0].mxu0
    %v262 = vpop.f32.mrb[0].mxu0
    %v263 = vadd.f32 0.0, %v262
    %v264 = vpop.f32.mrb[0].mxu0
    %265 = vmatprep.mubr.bf16.mxu0 0
    %266 = vmatmul.mubr.bf16.gmra.mrb[0].mxu0 %v180
    %v267 = vpop.f32.mrb[0].mxu0
    %v268 = vadd.f32 0.0, %v267
    %v269 = vpop.f32.mrb[0].mxu0
    %v270 = vpop.f32.mrb[0].mxu0
    %v271 = vadd.f32 0.0, %v270
    %v272 = vpop.f32.mrb[0].mxu0
    %273 = vmatprep.mubr.bf16.mxu0 0
    %274 = vmatmul.mubr.bf16.gmra.mrb[0].mxu0 %v183
    %v275 = vpop.f32.mrb[0].mxu0
    %v276 = vadd.f32 0.0, %v275
    %v277 = vpop.f32.mrb[0].mxu0
    %v278 = vpop.f32.mrb[0].mxu0
    %v279 = vadd.f32 0.0, %v278
    %v280 = vpop.f32.mrb[0].mxu0
    %281 = vdwg.mxu0
    %v282 = vpack.c.bf16 %v223, %v220
    %v283 = vpack.c.bf16 %v231, %v228
    %v284 = vpack.c.bf16 %v239, %v236
    %v285 = vpack.c.bf16 %v247, %v244
    %v286 = vpack.c.bf16 %v255, %v252
    %v287 = vpack.c.bf16 %v263, %v260
    %v288 = vpack.c.bf16 %v271, %v268
    %v289 = vpack.c.bf16 %v279, %v276
    %v290 = vmul.bf16 %v282, 1045249613
    %v291 = vmul.bf16 %v283, 1045249613
    %v292 = vmul.bf16 %v284, 1045249613
    %v293 = vmul.bf16 %v285, 1045249613
    %v294 = vmul.bf16 %v286, 1045249613
    %v295 = vmul.bf16 %v287, 1045249613
    %v296 = vmul.bf16 %v288, 1045249613
    %v297 = vmul.bf16 %v289, 1045249613
    %v298 = vmax.bf16 %v282, %v290
    %v299 = vmax.bf16 %v283, %v291
    %v300 = vmax.bf16 %v284, %v292
    %v301 = vmax.bf16 %v285, %v293
    %v302 = vmax.bf16 %v286, %v294
    %v303 = vmax.bf16 %v287, %v295
    %v304 = vmax.bf16 %v288, %v296
    %v305 = vmax.bf16 %v289, %v297
    %v306 = vld [vmem:[%s2] sm:$0xf]
    %v307 = vld [vmem:[%s2 + $0x4] sm:$0xf]
    %v308 = vld [vmem:[%s2 + $0x8] sm:$0xf]
    %v309 = vld [vmem:[%s2 + $0xc] sm:$0xf]
    %v310 = vld [vmem:[%s2 + $0x10] sm:$0xf]
    %v311 = vld [vmem:[%s2 + $0x14] sm:$0xf]
    %v312 = vld [vmem:[%s2 + $0x18] sm:$0xf]
    %v313 = vld [vmem:[%s2 + $0x1c] sm:$0xf]
    %v314 = vld [vmem:[%s2 + $0x20] sm:$0xf]
    %v315 = vld [vmem:[%s2 + $0x24] sm:$0xf]
    %v316 = vld [vmem:[%s2 + $0x28] sm:$0xf]
    %v317 = vld [vmem:[%s2 + $0x2c] sm:$0xf]
    %v318 = vld [vmem:[%s2 + $0x30] sm:$0xf]
    %v319 = vld [vmem:[%s2 + $0x34] sm:$0xf]
    %v320 = vld [vmem:[%s2 + $0x38] sm:$0xf]
    %v321 = vld [vmem:[%s2 + $0x3c] sm:$0xf]
    %v338 = vunpack.c.l.b16 %v306
    %v339 = vunpack.c.l.b16 %v307
    %v340 = vunpack.c.l.b16 %v308
    %v341 = vunpack.c.l.b16 %v309
    %v342 = vunpack.c.l.b16 %v310
    %v343 = vunpack.c.l.b16 %v311
    %v344 = vunpack.c.l.b16 %v312
    %v345 = vunpack.c.l.b16 %v313
    %v346 = vunpack.c.l.b16 %v314
    %v347 = vunpack.c.l.b16 %v315
    %v348 = vunpack.c.l.b16 %v316
    %v349 = vunpack.c.l.b16 %v317
    %v350 = vunpack.c.l.b16 %v318
    %v351 = vunpack.c.l.b16 %v319
    %v352 = vunpack.c.l.b16 %v320
    %v353 = vunpack.c.l.b16 %v321
    %v354 = vpack.c.b16 %v339, %v338
    %v355 = vpack.c.b16 %v341, %v340
    %v356 = vpack.c.b16 %v343, %v342
    %v357 = vpack.c.b16 %v345, %v344
    %v358 = vpack.c.b16 %v347, %v346
    %v359 = vpack.c.b16 %v349, %v348
    %v360 = vpack.c.b16 %v351, %v350
    %v361 = vpack.c.b16 %v353, %v352
    %370 = vmatprep.subr.bf16.mxu0 0
    %371 = vmatpush1.bf16.msra.mxu0 %v298
    %372 = vmatprep.subr.bf16.mxu0 0
    %373 = vmatpush1.bf16.msra.mxu0 %v299
    %374 = vmatprep.subr.bf16.mxu0 0
    %375 = vmatpush1.bf16.msra.mxu0 %v300
    %376 = vmatprep.subr.bf16.mxu0 0
    %377 = vmatpush1.bf16.msra.mxu0 %v301
    %378 = vmatprep.subr.bf16.mxu0 0
    %379 = vmatpush1.bf16.msra.mxu0 %v302
    %380 = vmatprep.subr.bf16.mxu0 0
    %381 = vmatpush1.bf16.msra.mxu0 %v303
    %382 = vmatprep.subr.bf16.mxu0 0
    %383 = vmatpush1.bf16.msra.mxu0 %v304
    %384 = vmatprep.subr.bf16.mxu0 0
    %385 = vmatpush1.bf16.msra.mxu0 %v305
    %386 = vmatprep.subr.bf16.mxu0 0
    %387 = vmatpush1.bf16.msra.mxu0 0
    %388 = vmatprep.subr.bf16.mxu0 0
    %389 = vmatpush1.bf16.msra.mxu0 0
    %390 = vmatprep.subr.bf16.mxu0 0
    %391 = vmatpush1.bf16.msra.mxu0 0
    %392 = vmatprep.subr.bf16.mxu0 0
    %393 = vmatpush1.bf16.msra.mxu0 0
    %394 = vmatprep.subr.bf16.mxu0 0
    %395 = vmatpush1.bf16.msra.mxu0 0
    %396 = vmatprep.subr.bf16.mxu0 0
    %397 = vmatpush1.bf16.msra.mxu0 0
    %398 = vmatprep.subr.bf16.mxu0 0
    %399 = vmatpush1.bf16.msra.mxu0 0
    %400 = vmatprep.subr.bf16.mxu0 0
    %401 = vmatpush1.bf16.msra.mxu0 0
    %402 = vmatprep.mubr.bf16.mxu0 0
    %403 = vmatmul.mubr.bf16.gmra.mrb[0].mxu0 %v354
    %v404 = vpop.f32.mrb[0].mxu0
    %v405 = vadd.f32 0.0, %v404
    %v406 = vpop.f32.mrb[0].mxu0
    %v407 = vpop.f32.mrb[0].mxu0
    %v408 = vadd.f32 0.0, %v407
    %v409 = vpop.f32.mrb[0].mxu0
    %410 = vmatprep.mubr.bf16.mxu0 0
    %411 = vmatmul.mubr.bf16.gmra.mrb[0].mxu0 %v355
    %v412 = vpop.f32.mrb[0].mxu0
    %v413 = vadd.f32 0.0, %v412
    %v414 = vpop.f32.mrb[0].mxu0
    %v415 = vpop.f32.mrb[0].mxu0
    %v416 = vadd.f32 0.0, %v415
    %v417 = vpop.f32.mrb[0].mxu0
    %418 = vmatprep.mubr.bf16.mxu0 0
    %419 = vmatmul.mubr.bf16.gmra.mrb[0].mxu0 %v356
    %v420 = vpop.f32.mrb[0].mxu0
    %v421 = vadd.f32 0.0, %v420
    %v422 = vpop.f32.mrb[0].mxu0
    %v423 = vpop.f32.mrb[0].mxu0
    %v424 = vadd.f32 0.0, %v423
    %v425 = vpop.f32.mrb[0].mxu0
    %426 = vmatprep.mubr.bf16.mxu0 0
    %427 = vmatmul.mubr.bf16.gmra.mrb[0].mxu0 %v357
    %v428 = vpop.f32.mrb[0].mxu0
    %v429 = vadd.f32 0.0, %v428
    %v430 = vpop.f32.mrb[0].mxu0
    %v431 = vpop.f32.mrb[0].mxu0
    %v432 = vadd.f32 0.0, %v431
    %v433 = vpop.f32.mrb[0].mxu0
    %434 = vmatprep.mubr.bf16.mxu0 0
    %435 = vmatmul.mubr.bf16.gmra.mrb[0].mxu0 %v358
    %v436 = vpop.f32.mrb[0].mxu0
    %v437 = vadd.f32 0.0, %v436
    %v438 = vpop.f32.mrb[0].mxu0
    %v439 = vpop.f32.mrb[0].mxu0
    %v440 = vadd.f32 0.0, %v439
    %v441 = vpop.f32.mrb[0].mxu0
    %442 = vmatprep.mubr.bf16.mxu0 0
    %443 = vmatmul.mubr.bf16.gmra.mrb[0].mxu0 %v359
    %v444 = vpop.f32.mrb[0].mxu0
    %v445 = vadd.f32 0.0, %v444
    %v446 = vpop.f32.mrb[0].mxu0
    %v447 = vpop.f32.mrb[0].mxu0
    %v448 = vadd.f32 0.0, %v447
    %v449 = vpop.f32.mrb[0].mxu0
    %450 = vmatprep.mubr.bf16.mxu0 0
    %451 = vmatmul.mubr.bf16.gmra.mrb[0].mxu0 %v360
    %v452 = vpop.f32.mrb[0].mxu0
    %v453 = vadd.f32 0.0, %v452
    %v454 = vpop.f32.mrb[0].mxu0
    %v455 = vpop.f32.mrb[0].mxu0
    %v456 = vadd.f32 0.0, %v455
    %v457 = vpop.f32.mrb[0].mxu0
    %458 = vmatprep.mubr.bf16.mxu0 0
    %459 = vmatmul.mubr.bf16.gmra.mrb[0].mxu0 %v361
    %v460 = vpop.f32.mrb[0].mxu0
    %v461 = vadd.f32 0.0, %v460
    %v462 = vpop.f32.mrb[0].mxu0
    %v463 = vpop.f32.mrb[0].mxu0
    %v464 = vadd.f32 0.0, %v463
    %v465 = vpop.f32.mrb[0].mxu0
    %466 = vdwg.mxu0
    %v467 = vpack.c.bf16 %v408, %v405
    %v468 = vpack.c.bf16 %v416, %v413
    %v469 = vpack.c.bf16 %v424, %v421
    %v470 = vpack.c.bf16 %v432, %v429
    %v471 = vpack.c.bf16 %v440, %v437
    %v472 = vpack.c.bf16 %v448, %v445
    %v473 = vpack.c.bf16 %v456, %v453
    %v474 = vpack.c.bf16 %v464, %v461
    %v475 = vmul.bf16 %v467, 1045249613
    %v476 = vmul.bf16 %v468, 1045249613
    %v477 = vmul.bf16 %v469, 1045249613
    %v478 = vmul.bf16 %v470, 1045249613
    %v479 = vmul.bf16 %v471, 1045249613
    %v480 = vmul.bf16 %v472, 1045249613
    %v481 = vmul.bf16 %v473, 1045249613
    %v482 = vmul.bf16 %v474, 1045249613
    %v483 = vmax.bf16 %v467, %v475
    %v484 = vmax.bf16 %v468, %v476
    %v485 = vmax.bf16 %v469, %v477
    %v486 = vmax.bf16 %v470, %v478
    %v487 = vmax.bf16 %v471, %v479
    %v488 = vmax.bf16 %v472, %v480
    %v489 = vmax.bf16 %v473, %v481
    %v490 = vmax.bf16 %v474, %v482
    %v491 = vld [vmem:[#allocation2] sm:$0xf]
    %v492 = vld [vmem:[#allocation2 + $0x4] sm:$0xf]
    %v493 = vld [vmem:[#allocation2 + $0x8] sm:$0xf]
    %v494 = vld [vmem:[#allocation2 + $0xc] sm:$0xf]
    %v495 = vld [vmem:[#allocation2 + $0x10] sm:$0xf]
    %v496 = vld [vmem:[#allocation2 + $0x14] sm:$0xf]
    %v497 = vld [vmem:[#allocation2 + $0x18] sm:$0xf]
    %v498 = vld [vmem:[#allocation2 + $0x1c] sm:$0xf]
    %v499 = vld [vmem:[#allocation2 + $0x20] sm:$0xf]
    %v500 = vld [vmem:[#allocation2 + $0x24] sm:$0xf]
    %v501 = vld [vmem:[#allocation2 + $0x28] sm:$0xf]
    %v502 = vld [vmem:[#allocation2 + $0x2c] sm:$0xf]
    %v503 = vld [vmem:[#allocation2 + $0x30] sm:$0xf]
    %v504 = vld [vmem:[#allocation2 + $0x34] sm:$0xf]
    %v505 = vld [vmem:[#allocation2 + $0x38] sm:$0xf]
    %v506 = vld [vmem:[#allocation2 + $0x3c] sm:$0xf]
    %v523 = vunpack.c.l.b16 %v491
    %v524 = vunpack.c.l.b16 %v492
    %v525 = vunpack.c.l.b16 %v493
    %v526 = vunpack.c.l.b16 %v494
    %v527 = vunpack.c.l.b16 %v495
    %v528 = vunpack.c.l.b16 %v496
    %v529 = vunpack.c.l.b16 %v497
    %v530 = vunpack.c.l.b16 %v498
    %v531 = vunpack.c.l.b16 %v499
    %v532 = vunpack.c.l.b16 %v500
    %v533 = vunpack.c.l.b16 %v501
    %v534 = vunpack.c.l.b16 %v502
    %v535 = vunpack.c.l.b16 %v503
    %v536 = vunpack.c.l.b16 %v504
    %v537 = vunpack.c.l.b16 %v505
    %v538 = vunpack.c.l.b16 %v506
    %v539 = vpack.c.b16 %v524, %v523
    %v540 = vpack.c.b16 %v526, %v525
    %v541 = vpack.c.b16 %v528, %v527
    %v542 = vpack.c.b16 %v530, %v529
    %v543 = vpack.c.b16 %v532, %v531
    %v544 = vpack.c.b16 %v534, %v533
    %v545 = vpack.c.b16 %v536, %v535
    %v546 = vpack.c.b16 %v538, %v537
    %555 = vmatprep.subr.bf16.mxu0 0
    %556 = vmatpush1.bf16.msra.mxu0 %v483
    %557 = vmatprep.subr.bf16.mxu0 0
    %558 = vmatpush1.bf16.msra.mxu0 %v484
    %559 = vmatprep.subr.bf16.mxu0 0
    %560 = vmatpush1.bf16.msra.mxu0 %v485
    %561 = vmatprep.subr.bf16.mxu0 0
    %562 = vmatpush1.bf16.msra.mxu0 %v486
    %563 = vmatprep.subr.bf16.mxu0 0
    %564 = vmatpush1.bf16.msra.mxu0 %v487
    %565 = vmatprep.subr.bf16.mxu0 0
    %566 = vmatpush1.bf16.msra.mxu0 %v488
    %567 = vmatprep.subr.bf16.mxu0 0
    %568 = vmatpush1.bf16.msra.mxu0 %v489
    %569 = vmatprep.subr.bf16.mxu0 0
    %570 = vmatpush1.bf16.msra.mxu0 %v490
    %571 = vmatprep.subr.bf16.mxu0 0
    %572 = vmatpush1.bf16.msra.mxu0 0
    %573 = vmatprep.subr.bf16.mxu0 0
    %574 = vmatpush1.bf16.msra.mxu0 0
    %575 = vmatprep.subr.bf16.mxu0 0
    %576 = vmatpush1.bf16.msra.mxu0 0
    %577 = vmatprep.subr.bf16.mxu0 0
    %578 = vmatpush1.bf16.msra.mxu0 0
    %579 = vmatprep.subr.bf16.mxu0 0
    %580 = vmatpush1.bf16.msra.mxu0 0
    %581 = vmatprep.subr.bf16.mxu0 0
    %582 = vmatpush1.bf16.msra.mxu0 0
    %583 = vmatprep.subr.bf16.mxu0 0
    %584 = vmatpush1.bf16.msra.mxu0 0
    %585 = vmatprep.subr.bf16.mxu0 0
    %586 = vmatpush1.bf16.msra.mxu0 0
    %587 = vmatprep.mubr.bf16.mxu0 0
    %588 = vmatmul.mubr.bf16.gmra.mrb[0].mxu0 %v539
    %v589 = vpop.f32.mrb[0].mxu0
    %v590 = vadd.f32 0.0, %v589
    %v591 = vpop.f32.mrb[0].mxu0
    %v592 = vpop.f32.mrb[0].mxu0
    %v593 = vadd.f32 0.0, %v592
    %v594 = vpop.f32.mrb[0].mxu0
    %595 = vmatprep.mubr.bf16.mxu0 0
    %596 = vmatmul.mubr.bf16.gmra.mrb[0].mxu0 %v540
    %v597 = vpop.f32.mrb[0].mxu0
    %v598 = vadd.f32 0.0, %v597
    %v599 = vpop.f32.mrb[0].mxu0
    %v600 = vpop.f32.mrb[0].mxu0
    %v601 = vadd.f32 0.0, %v600
    %v602 = vpop.f32.mrb[0].mxu0
    %603 = vmatprep.mubr.bf16.mxu0 0
    %604 = vmatmul.mubr.bf16.gmra.mrb[0].mxu0 %v541
    %v605 = vpop.f32.mrb[0].mxu0
    %v606 = vadd.f32 0.0, %v605
    %v607 = vpop.f32.mrb[0].mxu0
    %v608 = vpop.f32.mrb[0].mxu0
    %v609 = vadd.f32 0.0, %v608
    %v610 = vpop.f32.mrb[0].mxu0
    %611 = vmatprep.mubr.bf16.mxu0 0
    %612 = vmatmul.mubr.bf16.gmra.mrb[0].mxu0 %v542
    %v613 = vpop.f32.mrb[0].mxu0
    %v614 = vadd.f32 0.0, %v613
    %v615 = vpop.f32.mrb[0].mxu0
    %v616 = vpop.f32.mrb[0].mxu0
    %v617 = vadd.f32 0.0, %v616
    %v618 = vpop.f32.mrb[0].mxu0
    %619 = vmatprep.mubr.bf16.mxu0 0
    %620 = vmatmul.mubr.bf16.gmra.mrb[0].mxu0 %v543
    %v621 = vpop.f32.mrb[0].mxu0
    %v622 = vadd.f32 0.0, %v621
    %v623 = vpop.f32.mrb[0].mxu0
    %v624 = vpop.f32.mrb[0].mxu0
    %v625 = vadd.f32 0.0, %v624
    %v626 = vpop.f32.mrb[0].mxu0
    %627 = vmatprep.mubr.bf16.mxu0 0
    %628 = vmatmul.mubr.bf16.gmra.mrb[0].mxu0 %v544
    %v629 = vpop.f32.mrb[0].mxu0
    %v630 = vadd.f32 0.0, %v629
    %v631 = vpop.f32.mrb[0].mxu0
    %v632 = vpop.f32.mrb[0].mxu0
    %v633 = vadd.f32 0.0, %v632
    %v634 = vpop.f32.mrb[0].mxu0
    %635 = vmatprep.mubr.bf16.mxu0 0
    %636 = vmatmul.mubr.bf16.gmra.mrb[0].mxu0 %v545
    %v637 = vpop.f32.mrb[0].mxu0
    %v638 = vadd.f32 0.0, %v637
    %v639 = vpop.f32.mrb[0].mxu0
    %v640 = vpop.f32.mrb[0].mxu0
    %v641 = vadd.f32 0.0, %v640
    %v642 = vpop.f32.mrb[0].mxu0
    %643 = vmatprep.mubr.bf16.mxu0 0
    %644 = vmatmul.mubr.bf16.gmra.mrb[0].mxu0 %v546
    %v645 = vpop.f32.mrb[0].mxu0
    %v646 = vadd.f32 0.0, %v645
    %v647 = vpop.f32.mrb[0].mxu0
    %v648 = vpop.f32.mrb[0].mxu0
    %v649 = vadd.f32 0.0, %v648
    %v650 = vpop.f32.mrb[0].mxu0
    %651 = vdwg.mxu0
    %v652 = vpack.c.bf16 %v593, %v590
    %v653 = vpack.c.bf16 %v601, %v598
    %v654 = vpack.c.bf16 %v609, %v606
    %v655 = vpack.c.bf16 %v617, %v614
    %v656 = vpack.c.bf16 %v625, %v622
    %v657 = vpack.c.bf16 %v633, %v630
    %v658 = vpack.c.bf16 %v641, %v638
    %v659 = vpack.c.bf16 %v649, %v646
    %v660 = vmul.bf16 %v652, 1045249613
    %v661 = vmul.bf16 %v653, 1045249613
    %v662 = vmul.bf16 %v654, 1045249613
    %v663 = vmul.bf16 %v655, 1045249613
    %v664 = vmul.bf16 %v656, 1045249613
    %v665 = vmul.bf16 %v657, 1045249613
    %v666 = vmul.bf16 %v658, 1045249613
    %v667 = vmul.bf16 %v659, 1045249613
    %v668 = vmax.bf16 %v652, %v660
    %v669 = vmax.bf16 %v653, %v661
    %v670 = vmax.bf16 %v654, %v662
    %v671 = vmax.bf16 %v655, %v663
    %v672 = vmax.bf16 %v656, %v664
    %v673 = vmax.bf16 %v657, %v665
    %v674 = vmax.bf16 %v658, %v666
    %v675 = vmax.bf16 %v659, %v667
    %v676 = vld [vmem:[#allocation5] sm:$0xf]
    %v677 = vld [vmem:[#allocation5 + $0x4] sm:$0xf]
    %v678 = vld [vmem:[#allocation5 + $0x8] sm:$0xf]
    %v679 = vld [vmem:[#allocation5 + $0xc] sm:$0xf]
    %v680 = vld [vmem:[#allocation5 + $0x10] sm:$0xf]
    %v681 = vld [vmem:[#allocation5 + $0x14] sm:$0xf]
    %v682 = vld [vmem:[#allocation5 + $0x18] sm:$0xf]
    %v683 = vld [vmem:[#allocation5 + $0x1c] sm:$0xf]
    %v684 = vld [vmem:[#allocation5 + $0x20] sm:$0xf]
    %v685 = vld [vmem:[#allocation5 + $0x24] sm:$0xf]
    %v686 = vld [vmem:[#allocation5 + $0x28] sm:$0xf]
    %v687 = vld [vmem:[#allocation5 + $0x2c] sm:$0xf]
    %v688 = vld [vmem:[#allocation5 + $0x30] sm:$0xf]
    %v689 = vld [vmem:[#allocation5 + $0x34] sm:$0xf]
    %v690 = vld [vmem:[#allocation5 + $0x38] sm:$0xf]
    %v691 = vld [vmem:[#allocation5 + $0x3c] sm:$0xf]
    %v708 = vunpack.c.l.b16 %v676
    %v709 = vunpack.c.l.b16 %v677
    %v710 = vunpack.c.l.b16 %v678
    %v711 = vunpack.c.l.b16 %v679
    %v712 = vunpack.c.l.b16 %v680
    %v713 = vunpack.c.l.b16 %v681
    %v714 = vunpack.c.l.b16 %v682
    %v715 = vunpack.c.l.b16 %v683
    %v716 = vunpack.c.l.b16 %v684
    %v717 = vunpack.c.l.b16 %v685
    %v718 = vunpack.c.l.b16 %v686
    %v719 = vunpack.c.l.b16 %v687
    %v720 = vunpack.c.l.b16 %v688
    %v721 = vunpack.c.l.b16 %v689
    %v722 = vunpack.c.l.b16 %v690
    %v723 = vunpack.c.l.b16 %v691
    %v724 = vpack.c.b16 %v709, %v708
    %v725 = vpack.c.b16 %v711, %v710
    %v726 = vpack.c.b16 %v713, %v712
    %v727 = vpack.c.b16 %v715, %v714
    %v728 = vpack.c.b16 %v717, %v716
    %v729 = vpack.c.b16 %v719, %v718
    %v730 = vpack.c.b16 %v721, %v720
    %v731 = vpack.c.b16 %v723, %v722
    %740 = vmatprep.subr.bf16.mxu0 0
    %741 = vmatpush1.bf16.msra.mxu0 %v668
    %742 = vmatprep.subr.bf16.mxu0 0
    %743 = vmatpush1.bf16.msra.mxu0 %v669
    %744 = vmatprep.subr.bf16.mxu0 0
    %745 = vmatpush1.bf16.msra.mxu0 %v670
    %746 = vmatprep.subr.bf16.mxu0 0
    %747 = vmatpush1.bf16.msra.mxu0 %v671
    %748 = vmatprep.subr.bf16.mxu0 0
    %749 = vmatpush1.bf16.msra.mxu0 %v672
    %750 = vmatprep.subr.bf16.mxu0 0
    %751 = vmatpush1.bf16.msra.mxu0 %v673
    %752 = vmatprep.subr.bf16.mxu0 0
    %753 = vmatpush1.bf16.msra.mxu0 %v674
    %754 = vmatprep.subr.bf16.mxu0 0
    %755 = vmatpush1.bf16.msra.mxu0 %v675
    %756 = vmatprep.subr.bf16.mxu0 0
    %757 = vmatpush1.bf16.msra.mxu0 0
    %758 = vmatprep.subr.bf16.mxu0 0
    %759 = vmatpush1.bf16.msra.mxu0 0
    %760 = vmatprep.subr.bf16.mxu0 0
    %761 = vmatpush1.bf16.msra.mxu0 0
    %762 = vmatprep.subr.bf16.mxu0 0
    %763 = vmatpush1.bf16.msra.mxu0 0
    %764 = vmatprep.subr.bf16.mxu0 0
    %765 = vmatpush1.bf16.msra.mxu0 0
    %766 = vmatprep.subr.bf16.mxu0 0
    %767 = vmatpush1.bf16.msra.mxu0 0
    %768 = vmatprep.subr.bf16.mxu0 0
    %769 = vmatpush1.bf16.msra.mxu0 0
    %770 = vmatprep.subr.bf16.mxu0 0
    %771 = vmatpush1.bf16.msra.mxu0 0
    %772 = vmatprep.mubr.bf16.mxu0 0
    %773 = vmatmul.mubr.bf16.gmra.mrb[0].mxu0 %v724
    %v774 = vpop.f32.mrb[0].mxu0
    %v775 = vadd.f32 0.0, %v774
    %v776 = vpop.f32.mrb[0].mxu0
    %v777 = vpop.f32.mrb[0].mxu0
    %v778 = vadd.f32 0.0, %v777
    %v779 = vpop.f32.mrb[0].mxu0
    %780 = vmatprep.mubr.bf16.mxu0 0
    %781 = vmatmul.mubr.bf16.gmra.mrb[0].mxu0 %v725
    %v782 = vpop.f32.mrb[0].mxu0
    %v783 = vadd.f32 0.0, %v782
    %v784 = vpop.f32.mrb[0].mxu0
    %v785 = vpop.f32.mrb[0].mxu0
    %v786 = vadd.f32 0.0, %v785
    %v787 = vpop.f32.mrb[0].mxu0
    %788 = vmatprep.mubr.bf16.mxu0 0
    %789 = vmatmul.mubr.bf16.gmra.mrb[0].mxu0 %v726
    %v790 = vpop.f32.mrb[0].mxu0
    %v791 = vadd.f32 0.0, %v790
    %v792 = vpop.f32.mrb[0].mxu0
    %v793 = vpop.f32.mrb[0].mxu0
    %v794 = vadd.f32 0.0, %v793
    %v795 = vpop.f32.mrb[0].mxu0
    %796 = vmatprep.mubr.bf16.mxu0 0
    %797 = vmatmul.mubr.bf16.gmra.mrb[0].mxu0 %v727
    %v798 = vpop.f32.mrb[0].mxu0
    %v799 = vadd.f32 0.0, %v798
    %v800 = vpop.f32.mrb[0].mxu0
    %v801 = vpop.f32.mrb[0].mxu0
    %v802 = vadd.f32 0.0, %v801
    %v803 = vpop.f32.mrb[0].mxu0
    %804 = vmatprep.mubr.bf16.mxu0 0
    %805 = vmatmul.mubr.bf16.gmra.mrb[0].mxu0 %v728
    %v806 = vpop.f32.mrb[0].mxu0
    %v807 = vadd.f32 0.0, %v806
    %v808 = vpop.f32.mrb[0].mxu0
    %v809 = vpop.f32.mrb[0].mxu0
    %v810 = vadd.f32 0.0, %v809
    %v811 = vpop.f32.mrb[0].mxu0
    %812 = vmatprep.mubr.bf16.mxu0 0
    %813 = vmatmul.mubr.bf16.gmra.mrb[0].mxu0 %v729
    %v814 = vpop.f32.mrb[0].mxu0
    %v815 = vadd.f32 0.0, %v814
    %v816 = vpop.f32.mrb[0].mxu0
    %v817 = vpop.f32.mrb[0].mxu0
    %v818 = vadd.f32 0.0, %v817
    %v819 = vpop.f32.mrb[0].mxu0
    %820 = vmatprep.mubr.bf16.mxu0 0
    %821 = vmatmul.mubr.bf16.gmra.mrb[0].mxu0 %v730
    %v822 = vpop.f32.mrb[0].mxu0
    %v823 = vadd.f32 0.0, %v822
    %v824 = vpop.f32.mrb[0].mxu0
    %v825 = vpop.f32.mrb[0].mxu0
    %v826 = vadd.f32 0.0, %v825
    %v827 = vpop.f32.mrb[0].mxu0
    %828 = vmatprep.mubr.bf16.mxu0 0
    %829 = vmatmul.mubr.bf16.gmra.mrb[0].mxu0 %v731
    %v830 = vpop.f32.mrb[0].mxu0
    %v831 = vadd.f32 0.0, %v830
    %v832 = vpop.f32.mrb[0].mxu0
    %v833 = vpop.f32.mrb[0].mxu0
    %v834 = vadd.f32 0.0, %v833
    %v835 = vpop.f32.mrb[0].mxu0
    %836 = vdwg.mxu0
    %v837 = vpack.c.bf16 %v778, %v775
    %v838 = vpack.c.bf16 %v786, %v783
    %v839 = vpack.c.bf16 %v794, %v791
    %v840 = vpack.c.bf16 %v802, %v799
    %v841 = vpack.c.bf16 %v810, %v807
    %v842 = vpack.c.bf16 %v818, %v815
    %v843 = vpack.c.bf16 %v826, %v823
    %v844 = vpack.c.bf16 %v834, %v831
    %v845 = vmul.bf16 %v837, 1045249613
    %v846 = vmul.bf16 %v838, 1045249613
    %v847 = vmul.bf16 %v839, 1045249613
    %v848 = vmul.bf16 %v840, 1045249613
    %v849 = vmul.bf16 %v841, 1045249613
    %v850 = vmul.bf16 %v842, 1045249613
    %v851 = vmul.bf16 %v843, 1045249613
    %v852 = vmul.bf16 %v844, 1045249613
    %v853 = vmax.bf16 %v837, %v845
    %v854 = vmax.bf16 %v838, %v846
    %v855 = vmax.bf16 %v839, %v847
    %v856 = vmax.bf16 %v840, %v848
    %v857 = vmax.bf16 %v841, %v849
    %v858 = vmax.bf16 %v842, %v850
    %v859 = vmax.bf16 %v843, %v851
    %v860 = vmax.bf16 %v844, %v852
    %v861 = vld [vmem:[%s5] sm:$0x1]
    %862 = vmatprep.subr.bf16.mxu0 0
    %863 = vmatpush1.bf16.msra.mxu0 %v853
    %864 = vmatprep.subr.bf16.mxu0 0
    %865 = vmatpush1.bf16.msra.mxu0 %v854
    %866 = vmatprep.subr.bf16.mxu0 0
    %867 = vmatpush1.bf16.msra.mxu0 %v855
    %868 = vmatprep.subr.bf16.mxu0 0
    %869 = vmatpush1.bf16.msra.mxu0 %v856
    %870 = vmatprep.subr.bf16.mxu0 0
    %871 = vmatpush1.bf16.msra.mxu0 %v857
    %872 = vmatprep.subr.bf16.mxu0 0
    %873 = vmatpush1.bf16.msra.mxu0 %v858
    %874 = vmatprep.subr.bf16.mxu0 0
    %875 = vmatpush1.bf16.msra.mxu0 %v859
    %876 = vmatprep.subr.bf16.mxu0 0
    %877 = vmatpush1.bf16.msra.mxu0 %v860
    %878 = vmatprep.subr.bf16.mxu0 0
    %879 = vmatpush1.bf16.msra.mxu0 0
    %880 = vmatprep.subr.bf16.mxu0 0
    %881 = vmatpush1.bf16.msra.mxu0 0
    %882 = vmatprep.subr.bf16.mxu0 0
    %883 = vmatpush1.bf16.msra.mxu0 0
    %884 = vmatprep.subr.bf16.mxu0 0
    %885 = vmatpush1.bf16.msra.mxu0 0
    %886 = vmatprep.subr.bf16.mxu0 0
    %887 = vmatpush1.bf16.msra.mxu0 0
    %888 = vmatprep.subr.bf16.mxu0 0
    %889 = vmatpush1.bf16.msra.mxu0 0
    %890 = vmatprep.subr.bf16.mxu0 0
    %891 = vmatpush1.bf16.msra.mxu0 0
    %892 = vmatprep.subr.bf16.mxu0 0
    %893 = vmatpush1.bf16.msra.mxu0 0
    %894 = vmatprep.mubr.bf16.mxu0 0
    %895 = vmatmul.mubr.bf16.gmra.mrb[0].mxu0 %v861
    %v896 = vpop.f32.mrb[0].mxu0
    %v897 = vadd.f32 0.0, %v896
    %v898 = vpop.f32.mrb[0].mxu0
    %v899 = vpop.f32.mrb[0].mxu0
    %v900 = vpop.f32.mrb[0].mxu0
    %901 = vdwg.mxu0
    %v902 = vxor.u32 %v897, 2147483648
    %v903 = vmul.f32 %v902, 1.442695
    %v904 = vpow.pop %v903
    %v905 = vadd.f32 %v904, 1.0
    %v906 = vrcp.pop %v905
    %v907 = vmul.f32 1.0, %v906
    %908 = vst [vmem:[#allocation7] sm:$0x1] %v907
    // Predicated region
    $region34: #{tpu_custom_call.1} parent=1 // pred_check
      _
    $region35: #{tpu_custom_call.1} parent=1 // pred_check_branch
      %910 = sbr.rel (0) target = $region37
    $region36: #{tpu_custom_call.1} parent=1 // pred_region
      %s912 = ssub.s32 16, 16
      %913 = vsyncadd [#allocation4], %s912
      %s915 = sshll.u32 [#allocation7], 4
      %s916 = int_to_ptr.vmem [resolvable:$true] %s915
      %918 = dma.vmem_to_hbm [thread:$0]  %s916, 16, %s6, [#allocation4]
    $region37: #{tpu_custom_call.1} parent=1 // pred_fallthru
      _
    // Predicated region
    $region38: #{tpu_custom_call.1} parent=1 // pred_check
      _
    $region39: #{tpu_custom_call.1} parent=1 // pred_check_branch
      %920 = sbr.rel (0) target = $region41
    $region40: #{tpu_custom_call.1} parent=1 // pred_region
      %921 = dma.done [#allocation4], 16
    $region41: #{tpu_custom_call.1} parent=1 // pred_fallthru
      _
    %922 = vsyncpa [#allocation3], 1
    %923 = vsyncpa [#allocation6], 1
    %924 = vsyncpa [#allocation4], 1

</llo_original>
